<compile_context>
chip_gen: v6e
topology: v6e:2x2x1
jax: 0.10.0
libtpu: 0.0.40
codegen_flags: <defaults>
</compile_context>

<pallas_src>
import functools
import math

import jax
import jax.numpy as jnp
from jax.experimental import pallas as pl
from jax.experimental.pallas import tpu as pltpu


def _interacting_kernel(x_ref, w_ref, o_ref, *, num_heads, head_dim, use_res):
    TB, F, E = x_ref.shape
    D = head_dim

    # Single fused, lane-dense projection: (TB*F, E) @ (E, 3E or 4E).
    x = x_ref[...].reshape(TB * F, E)
    proj = jnp.dot(x, w_ref[...], preferred_element_type=jnp.float32)

    if use_res:
        res = proj[:, 3 * E:4 * E].reshape(TB, F, E)

    for h in range(num_heads):  # static unroll (num_heads == 2)
        lo = h * D
        qh = proj[:, 0 * E + lo:0 * E + lo + D].reshape(TB, F, D)
        kh = proj[:, 1 * E + lo:1 * E + lo + D].reshape(TB, F, D)
        vh = proj[:, 2 * E + lo:2 * E + lo + D].reshape(TB, F, D)

        # scores over the field axis, batched over the batch tile: (TB, F, F)
        s = jnp.einsum('bik,bjk->bij', qh, kh,
                       preferred_element_type=jnp.float32)
        # numerically stable softmax over last axis (matches F.softmax)
        s = s - jnp.max(s, axis=-1, keepdims=True)
        p = jnp.exp(s)
        p = p * pl.reciprocal(jnp.sum(p, axis=-1, keepdims=True), approx=True)

        out_h = jnp.einsum('bij,bjd->bid', p, vh,
                           preferred_element_type=jnp.float32)  # (TB, F, D)
        if use_res:
            out_h = out_h + res[:, :, lo:lo + D]
        # Write this head's slice directly -> no concatenate / relayout.
        o_ref[:, :, lo:lo + D] = jnp.maximum(out_h, 0.0).astype(o_ref.dtype)


def interacting_layer(inputs, w_query, w_key, w_value, w_res=None, *,
                      use_res=True, scaling=False, batch_tile=None):
    B, F, E = inputs.shape
    assert E % 2 == 0, "embedding_size must be even (2 heads of size E // 2)"
    D = E // 2
    num_heads = 2

    # Fold the optional 1/sqrt(D) scaling into W_Q (one-time host op).
    wq = w_query * (1.0 / math.sqrt(D)) if scaling else w_query
    ws = [wq, w_key, w_value]
    if use_res:
        assert w_res is not None, "use_res=True requires w_res"
        ws.append(w_res)
    w_fused = jnp.concatenate([w.astype(jnp.float32) for w in ws], axis=1)
    WN = w_fused.shape[1]  # 4E (=128 for E=32) or 3E without residual

    # Batch tile: TB*F rows feed the MXU; large enough to amortize per-step
    # overhead, small enough to stay well inside the 32 MiB scoped VMEM
    # budget (safe on v5e/v6e/v7x).  Keep multiple grid steps when possible so
    # v7x's two TensorCores both get work (parallel axis).
    if batch_tile is None:
        batch_tile = 512
    TB = max(1, min(batch_tile, B))
    grid = (pl.cdiv(B, TB),)

    kernel = functools.partial(
        _interacting_kernel, num_heads=num_heads, head_dim=D, use_res=use_res)

    return pl.pallas_call(
        kernel,
        out_shape=jax.ShapeDtypeStruct((B, F, E), inputs.dtype),
        grid_spec=pltpu.PrefetchScalarGridSpec(
            num_scalar_prefetch=0,
            grid=grid,
            in_specs=[
                pl.BlockSpec((TB, F, E), lambda b: (b, 0, 0)),   # x batch tile
                pl.BlockSpec((E, WN), lambda b: (0, 0)),         # fused weights
            ],
            out_specs=pl.BlockSpec((TB, F, E), lambda b: (b, 0, 0)),
        ),
        compiler_params=pltpu.CompilerParams(
            dimension_semantics=("parallel",),
            vmem_limit_bytes=32 * 1024 * 1024),
    )(inputs, w_fused)


def interacting_layer_ref(inputs, w_query, w_key, w_value, w_res=None, *,
                          use_res=True, scaling=False):
    """Pure-JAX reference matching the PyTorch forward exactly."""
    E = inputs.shape[-1]
    D = E // 2
    q = jnp.tensordot(inputs, w_query, axes=([-1], [0]))
    k = jnp.tensordot(inputs, w_key, axes=([-1], [0]))
    v = jnp.tensordot(inputs, w_value, axes=([-1], [0]))
    qh = jnp.stack(jnp.split(q, E // D, axis=2))
    kh = jnp.stack(jnp.split(k, E // D, axis=2))
    vh = jnp.stack(jnp.split(v, E // D, axis=2))
    ip = jnp.einsum('bnik,bnjk->bnij', qh, kh)
    if scaling:
        ip = ip / (D ** 0.5)
    att = jax.nn.softmax(ip, axis=-1)
    res = jnp.matmul(att, vh)                        # (H, B, F, D)
    res = jnp.concatenate(jnp.split(res, res.shape[0], axis=0), axis=-1)
    res = jnp.squeeze(res, axis=0)                   # (B, F, E)
    if use_res:
        res = res + jnp.tensordot(inputs, w_res, axes=([-1], [0]))
    return jax.nn.relu(res)


if __name__ == "__main__":
    B, F, E = 2, 8, 32                               # batch, fields, embedding
    key = jax.random.PRNGKey(0)
    kx, kq, kk, kv, kr = jax.random.split(key, 5)

    x = jax.random.normal(kx, (B, F, E), dtype=jnp.float32)
    # deterministic normal(mean=0, std=0.05) init, as in the module __init__
    w_query = 0.05 * jax.random.normal(kq, (E, E), dtype=jnp.float32)
    w_key   = 0.05 * jax.random.normal(kk, (E, E), dtype=jnp.float32)
    w_value = 0.05 * jax.random.normal(kv, (E, E), dtype=jnp.float32)
    w_res   = 0.05 * jax.random.normal(kr, (E, E), dtype=jnp.float32)

    # Small shape: single grid step.
    out = interacting_layer(x, w_query, w_key, w_value, w_res,
                            use_res=True, scaling=False)
    out = jax.block_until_ready(out)
    ref = interacting_layer_ref(x, w_query, w_key, w_value, w_res,
                                use_res=True, scaling=False)
    assert out.shape == (B, F, E)
    assert jnp.allclose(out, ref, atol=2e-3, rtol=2e-3)

    # Multi-block grid + scaling (exercises batch tiling and W_Q folding).
    B2 = 96
    x2 = jax.random.normal(jax.random.PRNGKey(1), (B2, F, E), dtype=jnp.float32)
    out2 = interacting_layer(x2, w_query, w_key, w_value, w_res,
                             use_res=True, scaling=True, batch_tile=32)
    out2 = jax.block_until_ready(out2)
    ref2 = interacting_layer_ref(x2, w_query, w_key, w_value, w_res,
                                 use_res=True, scaling=True)
    assert jnp.allclose(out2, ref2, atol=2e-3, rtol=2e-3)

    print("KERNEL_OK")
</pallas_src>

<mosaic_0001>
module attributes {stable_mosaic.version = 11 : i64} {
  func.func @_interacting_kernel(%arg0: i32, %arg1: memref<2x8x32xf32, #tpu.memory_space<vmem>>, %arg2: memref<32x128xf32, #tpu.memory_space<vmem>>, %arg3: memref<2x8x32xf32, #tpu.memory_space<vmem>>) attributes {dimension_semantics = [#tpu.dimension_semantics<parallel>], iteration_bounds = array<i64: 1>, scalar_prefetch = 0 : i64, scratch_operands = 0 : i64, tpu.core_type = #tpu.core_type<tc>, window_params = [{transform_indices = @transform_0, window_bounds = array<i64: 2, 8, 32>}, {pipeline_mode = #tpu.pipeline_mode<synchronous>, transform_indices = @transform_1, window_bounds = array<i64: 32, 128>}, {transform_indices = @transform_2, window_bounds = array<i64: 2, 8, 32>}]} {
    %c0 = arith.constant 0 : index
    %c0_0 = arith.constant 0 : index
    %c0_1 = arith.constant 0 : index
    %0 = vector.load %arg1[%c0, %c0_0, %c0_1] : memref<2x8x32xf32, #tpu.memory_space<vmem>>, vector<2x8x32xf32>
    %1 = vector.shape_cast %0 : vector<2x8x32xf32> to vector<16x32xf32>
    %c0_2 = arith.constant 0 : index
    %c0_3 = arith.constant 0 : index
    %2 = vector.load %arg2[%c0_2, %c0_3] : memref<32x128xf32, #tpu.memory_space<vmem>>, vector<32x128xf32>
    %cst = arith.constant dense<0.000000e+00> : vector<16x128xf32>
    %3 = tpu.matmul %1, %2, %cst {dimension_numbers = #tpu.dot_dimension_numbers<[1], [0], [0], [1], [0, 0, 1, 1], [], []>} : vector<16x32xf32>, vector<32x128xf32>, vector<16x128xf32> -> vector<16x128xf32>
    %4 = vector.extract_strided_slice %3 {offsets = [0, 96], sizes = [16, 32], strides = [1, 1]} : vector<16x128xf32> to vector<16x32xf32>
    %5 = vector.shape_cast %4 : vector<16x32xf32> to vector<2x8x32xf32>
    %6 = vector.extract_strided_slice %3 {offsets = [0, 0], sizes = [16, 16], strides = [1, 1]} : vector<16x128xf32> to vector<16x16xf32>
    %7 = vector.shape_cast %6 : vector<16x16xf32> to vector<2x8x16xf32>
    %8 = vector.extract_strided_slice %3 {offsets = [0, 32], sizes = [16, 16], strides = [1, 1]} : vector<16x128xf32> to vector<16x16xf32>
    %9 = vector.shape_cast %8 : vector<16x16xf32> to vector<2x8x16xf32>
    %10 = vector.extract_strided_slice %3 {offsets = [0, 64], sizes = [16, 16], strides = [1, 1]} : vector<16x128xf32> to vector<16x16xf32>
    %11 = vector.shape_cast %10 : vector<16x16xf32> to vector<2x8x16xf32>
    "tpu.trace_start"() <{level = 10 : i32, message = "bik,bjk->bij"}> : () -> ()
    %cst_4 = arith.constant dense<0.000000e+00> : vector<2x8x8xf32>
    %12 = tpu.matmul %7, %9, %cst_4 {dimension_numbers = #tpu.dot_dimension_numbers<[2], [2], [1], [1], [0, 0, 0, 1, 1, 1], [0], [0]>} : vector<2x8x16xf32>, vector<2x8x16xf32>, vector<2x8x8xf32> -> vector<2x8x8xf32>
    "tpu.trace_stop"() : () -> ()
    %cst_5 = arith.constant dense<0xFF800000> : vector<2x8xf32>
    %13 = vector.multi_reduction <maximumf>, %12, %cst_5 [2] : vector<2x8x8xf32> to vector<2x8xf32>
    %14 = vector.shape_cast %13 : vector<2x8xf32> to vector<2x8x1xf32>
    %15 = vector.broadcast %14 : vector<2x8x1xf32> to vector<2x8x8xf32>
    %16 = arith.subf %12, %15 : vector<2x8x8xf32>
    %17 = math.exp %16 : vector<2x8x8xf32>
    %cst_6 = arith.constant dense<0.000000e+00> : vector<2x8xf32>
    %18 = vector.multi_reduction <add>, %17, %cst_6 [2] : vector<2x8x8xf32> to vector<2x8xf32>
    %19 = vector.shape_cast %18 : vector<2x8xf32> to vector<2x8x1xf32>
    %20 = tpu.reciprocal %19 {approx = true} : vector<2x8x1xf32> -> vector<2x8x1xf32>
    %21 = vector.broadcast %20 : vector<2x8x1xf32> to vector<2x8x8xf32>
    %22 = arith.mulf %17, %21 : vector<2x8x8xf32>
    "tpu.trace_start"() <{level = 10 : i32, message = "bij,bjd->bid"}> : () -> ()
    %cst_7 = arith.constant dense<0.000000e+00> : vector<2x8x16xf32>
    %23 = tpu.matmul %22, %11, %cst_7 {dimension_numbers = #tpu.dot_dimension_numbers<[2], [1], [1], [2], [0, 0, 0, 1, 1, 2], [0], [0]>} : vector<2x8x8xf32>, vector<2x8x16xf32>, vector<2x8x16xf32> -> vector<2x8x16xf32>
    "tpu.trace_stop"() : () -> ()
    %24 = vector.extract_strided_slice %5 {offsets = [0, 0, 0], sizes = [2, 8, 16], strides = [1, 1, 1]} : vector<2x8x32xf32> to vector<2x8x16xf32>
    %25 = arith.addf %23, %24 : vector<2x8x16xf32>
    %cst_8 = arith.constant 0.000000e+00 : f32
    %26 = vector.broadcast %cst_8 : f32 to vector<2x8x16xf32>
    %27 = arith.maximumf %25, %26 : vector<2x8x16xf32>
    %c0_9 = arith.constant 0 : index
    %c0_10 = arith.constant 0 : index
    %c0_11 = arith.constant 0 : index
    %28 = vector.load %arg3[%c0_9, %c0_10, %c0_11] : memref<2x8x32xf32, #tpu.memory_space<vmem>>, vector<2x8x16xf32>
    tpu.vector_store %arg3[%c0_9, %c0_10, %c0_11], %27 {strides = array<i32>} : memref<2x8x32xf32, #tpu.memory_space<vmem>>, vector<2x8x16xf32>,
    %29 = vector.extract_strided_slice %3 {offsets = [0, 16], sizes = [16, 16], strides = [1, 1]} : vector<16x128xf32> to vector<16x16xf32>
    %30 = vector.shape_cast %29 : vector<16x16xf32> to vector<2x8x16xf32>
    %31 = vector.extract_strided_slice %3 {offsets = [0, 48], sizes = [16, 16], strides = [1, 1]} : vector<16x128xf32> to vector<16x16xf32>
    %32 = vector.shape_cast %31 : vector<16x16xf32> to vector<2x8x16xf32>
    %33 = vector.extract_strided_slice %3 {offsets = [0, 80], sizes = [16, 16], strides = [1, 1]} : vector<16x128xf32> to vector<16x16xf32>
    %34 = vector.shape_cast %33 : vector<16x16xf32> to vector<2x8x16xf32>
    "tpu.trace_start"() <{level = 10 : i32, message = "bik,bjk->bij"}> : () -> ()
    %cst_12 = arith.constant dense<0.000000e+00> : vector<2x8x8xf32>
    %35 = tpu.matmul %30, %32, %cst_12 {dimension_numbers = #tpu.dot_dimension_numbers<[2], [2], [1], [1], [0, 0, 0, 1, 1, 1], [0], [0]>} : vector<2x8x16xf32>, vector<2x8x16xf32>, vector<2x8x8xf32> -> vector<2x8x8xf32>
    "tpu.trace_stop"() : () -> ()
    %cst_13 = arith.constant dense<0xFF800000> : vector<2x8xf32>
    %36 = vector.multi_reduction <maximumf>, %35, %cst_13 [2] : vector<2x8x8xf32> to vector<2x8xf32>
    %37 = vector.shape_cast %36 : vector<2x8xf32> to vector<2x8x1xf32>
    %38 = vector.broadcast %37 : vector<2x8x1xf32> to vector<2x8x8xf32>
    %39 = arith.subf %35, %38 : vector<2x8x8xf32>
    %40 = math.exp %39 : vector<2x8x8xf32>
    %cst_14 = arith.constant dense<0.000000e+00> : vector<2x8xf32>
    %41 = vector.multi_reduction <add>, %40, %cst_14 [2] : vector<2x8x8xf32> to vector<2x8xf32>
    %42 = vector.shape_cast %41 : vector<2x8xf32> to vector<2x8x1xf32>
    %43 = tpu.reciprocal %42 {approx = true} : vector<2x8x1xf32> -> vector<2x8x1xf32>
    %44 = vector.broadcast %43 : vector<2x8x1xf32> to vector<2x8x8xf32>
    %45 = arith.mulf %40, %44 : vector<2x8x8xf32>
    "tpu.trace_start"() <{level = 10 : i32, message = "bij,bjd->bid"}> : () -> ()
    %cst_15 = arith.constant dense<0.000000e+00> : vector<2x8x16xf32>
    %46 = tpu.matmul %45, %34, %cst_15 {dimension_numbers = #tpu.dot_dimension_numbers<[2], [1], [1], [2], [0, 0, 0, 1, 1, 2], [0], [0]>} : vector<2x8x8xf32>, vector<2x8x16xf32>, vector<2x8x16xf32> -> vector<2x8x16xf32>
    "tpu.trace_stop"() : () -> ()
    %47 = vector.extract_strided_slice %5 {offsets = [0, 0, 16], sizes = [2, 8, 16], strides = [1, 1, 1]} : vector<2x8x32xf32> to vector<2x8x16xf32>
    %48 = arith.addf %46, %47 : vector<2x8x16xf32>
    %cst_16 = arith.constant 0.000000e+00 : f32
    %49 = vector.broadcast %cst_16 : f32 to vector<2x8x16xf32>
    %50 = arith.maximumf %48, %49 : vector<2x8x16xf32>
    %c0_17 = arith.constant 0 : index
    %c0_18 = arith.constant 0 : index
    %c16 = arith.constant 16 : index
    %51 = vector.load %arg3[%c0_17, %c0_18, %c16] : memref<2x8x32xf32, #tpu.memory_space<vmem>>, vector<2x8x16xf32>
    tpu.vector_store %arg3[%c0_17, %c0_18, %c16], %50 {strides = array<i32>} : memref<2x8x32xf32, #tpu.memory_space<vmem>>, vector<2x8x16xf32>,
    return
  }
  func.func @transform_0(%arg0: i32) -> (i32, i32, i32) {
    %c0_i32 = arith.constant 0 : i32
    %c0_i32_0 = arith.constant 0 : i32
    %c0_i32_1 = arith.constant 0 : i32
    return %arg0, %c0_i32, %c0_i32_0 : i32, i32, i32
  }
  func.func @transform_1(%arg0: i32) -> (i32, i32) {
    %c0_i32 = arith.constant 0 : i32
    %c0_i32_0 = arith.constant 0 : i32
    %c0_i32_1 = arith.constant 0 : i32
    return %c0_i32, %c0_i32_0 : i32, i32
  }
  func.func @transform_2(%arg0: i32) -> (i32, i32, i32) {
    %c0_i32 = arith.constant 0 : i32
    %c0_i32_0 = arith.constant 0 : i32
    %c0_i32_1 = arith.constant 0 : i32
    return %arg0, %c0_i32, %c0_i32_0 : i32, i32, i32
  }
}

</mosaic_0001>

<llo_original>
// kernel: tpu_custom_call.1
$region0: #{tpu_custom_call.1}
  #allocation0 [shape = 'u32[]', space=smem, size = 0x4, offset = 0x4, fixed_abs, tag = 'smem constant byte address 0x4 - core index']
  #allocation1 [shape = 'u32[144,128]{1,0:T(1,128)}', space=vmem, size = 0x12000, scoped, tag = 'internal scratch']
  %s0 = inlined_call_operand.hbm [shape: f32[2,8,32], index: 0, kind: input, shape index: {}]
  %s1 = inlined_call_operand.hbm [shape: f32[32,128], index: 1, kind: input, shape index: {}]
  %s2 = inlined_call_operand.hbm [shape: f32[2,8,32], index: 2, kind: output, shape index: {}]
  %s3 = sld [smem:[#allocation0]]
  $region26: #{tpu_custom_call.1} parent=0
    _
  %s5 = ssub.s32 1, %s3
  %s6 = scalar_select 0, %s5, %s3
  $region1: #{tpu_custom_call.1} parent=0
    #allocation2 [shape = 'u8[8192]{0}', space=vmem, size = 0x2000, scoped, tag = 'input window, operand 0, single buffered']
    #allocation3 [shape = 's32[1]{0}', space=sflag, size = 0x4, scoped, tag = 'scoped memory for tpu_custom_call.1']
    #allocation4 [shape = 's32[1]{0}', space=sflag, size = 0x4, scoped, tag = 'scoped memory for tpu_custom_call.1']
    #allocation5 [shape = 'u8[16384]{0}', space=vmem, size = 0x4000, scoped, tag = 'input window, operand 1, single buffered']
    #allocation6 [shape = 's32[1]{0}', space=sflag, size = 0x4, scoped, tag = 'scoped memory for tpu_custom_call.1']
    #allocation7 [shape = 'u8[8192]{0}', space=vmem, size = 0x2000, scoped, tag = 'output window, operand 0, single buffered']
    %7 = vsyncpa [#allocation3], 0
    %8 = vsyncpa [#allocation6], 0
    %9 = vsyncpa [#allocation4], 0
    // Predicated region
    $region2: #{tpu_custom_call.1} parent=1 // pred_check
      _
    $region3: #{tpu_custom_call.1} parent=1 // pred_check_branch
      %11 = sbr.rel (0) target = $region5
    $region4: #{tpu_custom_call.1} parent=1 // pred_region
      %s13 = ssub.s32 256, 256
      %14 = vsyncadd [#allocation3], %s13
      %s15 = sshll.u32 [#allocation2], 4
      %s16 = int_to_ptr.vmem [resolvable:$true] %s15
      %21 = dma.hbm_to_vmem [thread:$0]  %s0, 256, %s16, [#allocation3], 128, 128, 8
    $region5: #{tpu_custom_call.1} parent=1 // pred_fallthru
      _
    // Predicated region
    $region6: #{tpu_custom_call.1} parent=1 // pred_check
      _
    $region7: #{tpu_custom_call.1} parent=1 // pred_check_branch
      %23 = sbr.rel (0) target = $region9
    $region8: #{tpu_custom_call.1} parent=1 // pred_region
      %s25 = ssub.s32 512, 512
      %26 = vsyncadd [#allocation6], %s25
      %s27 = sshll.u32 [#allocation5], 4
      %s28 = int_to_ptr.vmem [resolvable:$true] %s27
      %33 = dma.hbm_to_vmem [thread:$0]  %s1, 512, %s28, [#allocation6], 128, 128, 8
    $region9: #{tpu_custom_call.1} parent=1 // pred_fallthru
      _
    // Predicated region
    $region10: #{tpu_custom_call.1} parent=1 // pred_check
      _
    $region11: #{tpu_custom_call.1} parent=1 // pred_check_branch
      %35 = sbr.rel (0) target = $region13
    $region12: #{tpu_custom_call.1} parent=1 // pred_region
      %36 = dma.done [#allocation3], 256
    $region13: #{tpu_custom_call.1} parent=1 // pred_fallthru
      _
    // Predicated region
    $region14: #{tpu_custom_call.1} parent=1 // pred_check
      _
    $region15: #{tpu_custom_call.1} parent=1 // pred_check_branch
      %38 = sbr.rel (0) target = $region17
    $region16: #{tpu_custom_call.1} parent=1 // pred_region
      %39 = dma.done [#allocation6], 512
    $region17: #{tpu_custom_call.1} parent=1 // pred_fallthru
      _
    %v40 = vld [vmem:[#allocation2] sm:$0xff]
    %v41 = vld [vmem:[#allocation2 + $0x8] sm:$0xff]
    %v42 = vld [vmem:[#allocation5] sm:$0xff]
    %v43 = vld [vmem:[#allocation5 + $0x8] sm:$0xff]
    %v44 = vld [vmem:[#allocation5 + $0x10] sm:$0xff]
    %v45 = vld [vmem:[#allocation5 + $0x18] sm:$0xff]
    %vm46 = vcmask 261120
    %v48 = vsel %vm46, %v40, 0
    %v51 = vsel %vm46, %v41, 0
    %53 = vmatprep.subr.mxu0 0.0
    %54 = vmatpush1.msra.mxu0 0.0
    %55 = vmatprep.subr.mxu0 0.0
    %56 = vmatpush1.msra.mxu0 0.0
    %57 = vmatprep.subr.mxu0 0.0
    %58 = vmatpush1.msra.mxu0 0.0
    %59 = vmatprep.subr.mxu0 0.0
    %60 = vmatpush1.msra.mxu0 0.0
    %61 = vmatprep.subr.mxu0 0.0
    %62 = vmatpush1.msra.mxu0 0.0
    %63 = vmatprep.subr.mxu0 0.0
    %64 = vmatpush1.msra.mxu0 0.0
    %65 = vmatprep.subr.mxu0 0.0
    %66 = vmatpush1.msra.mxu0 0.0
    %67 = vmatprep.subr.mxu0 0.0
    %68 = vmatpush1.msra.mxu0 0.0
    %69 = vmatprep.subr.mxu0 0.0
    %70 = vmatpush1.msra.mxu0 0.0
    %71 = vmatprep.subr.mxu0 0.0
    %72 = vmatpush1.msra.mxu0 0.0
    %73 = vmatprep.subr.mxu0 0.0
    %74 = vmatpush1.msra.mxu0 0.0
    %75 = vmatprep.subr.mxu0 0.0
    %76 = vmatpush1.msra.mxu0 0.0
    %77 = vmatprep.subr.mxu0 0.0
    %78 = vmatpush1.msra.mxu0 %v45
    %79 = vmatprep.subr.mxu0 0.0
    %80 = vmatpush1.msra.mxu0 %v44
    %81 = vmatprep.subr.mxu0 0.0
    %82 = vmatpush1.msra.mxu0 %v43
    %83 = vmatprep.subr.mxu0 0.0
    %84 = vmatpush1.msra.mxu0 %v42
    %85 = vmatprep.subr.mxu0 0.0
    %86 = vmatpush2.msra.mxu0 0.0
    %87 = vmatprep.subr.mxu0 0.0
    %88 = vmatpush2.msra.mxu0 0.0
    %89 = vmatprep.subr.mxu0 0.0
    %90 = vmatpush2.msra.mxu0 0.0
    %91 = vmatprep.subr.mxu0 0.0
    %92 = vmatpush2.msra.mxu0 0.0
    %93 = vmatprep.subr.mxu0 0.0
    %94 = vmatpush2.msra.mxu0 0.0
    %95 = vmatprep.subr.mxu0 0.0
    %96 = vmatpush2.msra.mxu0 0.0
    %97 = vmatprep.subr.mxu0 0.0
    %98 = vmatpush2.msra.mxu0 0.0
    %99 = vmatprep.subr.mxu0 0.0
    %100 = vmatpush2.msra.mxu0 0.0
    %101 = vmatprep.subr.mxu0 0.0
    %102 = vmatpush2.msra.mxu0 0.0
    %103 = vmatprep.subr.mxu0 0.0
    %104 = vmatpush2.msra.mxu0 0.0
    %105 = vmatprep.subr.mxu0 0.0
    %106 = vmatpush2.msra.mxu0 0.0
    %107 = vmatprep.subr.mxu0 0.0
    %108 = vmatpush2.msra.mxu0 0.0
    %109 = vmatprep.subr.mxu0 0.0
    %110 = vmatpush2.msra.mxu0 0.0
    %111 = vmatprep.subr.mxu0 0.0
    %112 = vmatpush2.msra.mxu0 0.0
    %113 = vmatprep.subr.mxu0 0.0
    %114 = vmatpush2.msra.mxu0 0.0
    %115 = vmatprep.subr.mxu0 0.0
    %116 = vmatpush2.msra.mxu0 0.0
    %117 = vmatprep.mubr.f32.mxu0 0.0
    %118 = vmatmul.mubr.f32.gmra.mxu0 %v48
    %v119 = vpop.f32.mrf.mxu0
    %v120 = vadd.f32 0.0, %v119
    %v121 = vpop.f32.mrf.mxu0
    %122 = vmatprep.mubr.f32.mxu0 0.0
    %123 = vmatmul.mubr.f32.gmra.mxu0 %v51
    %v124 = vpop.f32.mrf.mxu0
    %v125 = vadd.f32 0.0, %v124
    %v126 = vpop.f32.mrf.mxu0
    %127 = vdwg.mxu0
    %129 = vrot.lane.b32.xlu0 %v120, 96
    %v130 = vpop.permute.xlu0 %129
    %vm131 = vcmask 130048
    %v132 = vsel %vm131, %v120, 0
    %v134 = vsel %vm131, %v130, 0
    %136 = vmatprep.subr.mxu0 0.0
    %137 = vmatpush1.xpose.msra.mxu0 0.0
    %138 = vmatprep.subr.mxu0 0.0
    %139 = vmatpush1.xpose.msra.mxu0 0.0
    %140 = vmatprep.subr.mxu0 0.0
    %141 = vmatpush1.xpose.msra.mxu0 0.0
    %142 = vmatprep.subr.mxu0 0.0
    %143 = vmatpush1.xpose.msra.mxu0 0.0
    %144 = vmatprep.subr.mxu0 0.0
    %145 = vmatpush1.xpose.msra.mxu0 0.0
    %146 = vmatprep.subr.mxu0 0.0
    %147 = vmatpush1.xpose.msra.mxu0 0.0
    %148 = vmatprep.subr.mxu0 0.0
    %149 = vmatpush1.xpose.msra.mxu0 0.0
    %150 = vmatprep.subr.mxu0 0.0
    %151 = vmatpush1.xpose.msra.mxu0 0.0
    %152 = vmatprep.subr.mxu0 0.0
    %153 = vmatpush1.xpose.msra.mxu0 0.0
    %154 = vmatprep.subr.mxu0 0.0
    %155 = vmatpush1.xpose.msra.mxu0 0.0
    %156 = vmatprep.subr.mxu0 0.0
    %157 = vmatpush1.xpose.msra.mxu0 0.0
    %158 = vmatprep.subr.mxu0 0.0
    %159 = vmatpush1.xpose.msra.mxu0 0.0
    %160 = vmatprep.subr.mxu0 0.0
    %161 = vmatpush1.xpose.msra.mxu0 0.0
    %162 = vmatprep.subr.mxu0 0.0
    %163 = vmatpush1.xpose.msra.mxu0 0.0
    %164 = vmatprep.subr.mxu0 0.0
    %165 = vmatpush1.xpose.msra.mxu0 0.0
    %166 = vmatprep.subr.mxu0 0.0
    %167 = vmatpush1.xpose.msra.mxu0 %v134
    %168 = vmatprep.subr.mxu0 0.0
    %169 = vmatpush2.xpose.msra.mxu0 0.0
    %170 = vmatprep.subr.mxu0 0.0
    %171 = vmatpush2.xpose.msra.mxu0 0.0
    %172 = vmatprep.subr.mxu0 0.0
    %173 = vmatpush2.xpose.msra.mxu0 0.0
    %174 = vmatprep.subr.mxu0 0.0
    %175 = vmatpush2.xpose.msra.mxu0 0.0
    %176 = vmatprep.subr.mxu0 0.0
    %177 = vmatpush2.xpose.msra.mxu0 0.0
    %178 = vmatprep.subr.mxu0 0.0
    %179 = vmatpush2.xpose.msra.mxu0 0.0
    %180 = vmatprep.subr.mxu0 0.0
    %181 = vmatpush2.xpose.msra.mxu0 0.0
    %182 = vmatprep.subr.mxu0 0.0
    %183 = vmatpush2.xpose.msra.mxu0 0.0
    %184 = vmatprep.subr.mxu0 0.0
    %185 = vmatpush2.xpose.msra.mxu0 0.0
    %186 = vmatprep.subr.mxu0 0.0
    %187 = vmatpush2.xpose.msra.mxu0 0.0
    %188 = vmatprep.subr.mxu0 0.0
    %189 = vmatpush2.xpose.msra.mxu0 0.0
    %190 = vmatprep.subr.mxu0 0.0
    %191 = vmatpush2.xpose.msra.mxu0 0.0
    %192 = vmatprep.subr.mxu0 0.0
    %193 = vmatpush2.xpose.msra.mxu0 0.0
    %194 = vmatprep.subr.mxu0 0.0
    %195 = vmatpush2.xpose.msra.mxu0 0.0
    %196 = vmatprep.subr.mxu0 0.0
    %197 = vmatpush2.xpose.msra.mxu0 0.0
    %198 = vmatprep.subr.mxu0 0.0
    %199 = vmatpush2.xpose.msra.mxu0 0.0
    %200 = vmatprep.mubr.f32.mxu0 0.0
    %201 = vmatmul.mubr.f32.gmra.mxu0 %v132
    %v202 = vpop.f32.mrf.mxu0
    %v203 = vadd.f32 0.0, %v202
    %v204 = vpop.f32.mrf.mxu0
    %205 = vdwg.mxu0
    %207 = vrot.lane.b32.xlu0 %v125, 96
    %v208 = vpop.permute.xlu0 %207
    %v209 = vsel %vm131, %v125, 0
    %v211 = vsel %vm131, %v208, 0
    %213 = vmatprep.subr.mxu0 0.0
    %214 = vmatpush1.xpose.msra.mxu0 0.0
    %215 = vmatprep.subr.mxu0 0.0
    %216 = vmatpush1.xpose.msra.mxu0 0.0
    %217 = vmatprep.subr.mxu0 0.0
    %218 = vmatpush1.xpose.msra.mxu0 0.0
    %219 = vmatprep.subr.mxu0 0.0
    %220 = vmatpush1.xpose.msra.mxu0 0.0
    %221 = vmatprep.subr.mxu0 0.0
    %222 = vmatpush1.xpose.msra.mxu0 0.0
    %223 = vmatprep.subr.mxu0 0.0
    %224 = vmatpush1.xpose.msra.mxu0 0.0
    %225 = vmatprep.subr.mxu0 0.0
    %226 = vmatpush1.xpose.msra.mxu0 0.0
    %227 = vmatprep.subr.mxu0 0.0
    %228 = vmatpush1.xpose.msra.mxu0 0.0
    %229 = vmatprep.subr.mxu0 0.0
    %230 = vmatpush1.xpose.msra.mxu0 0.0
    %231 = vmatprep.subr.mxu0 0.0
    %232 = vmatpush1.xpose.msra.mxu0 0.0
    %233 = vmatprep.subr.mxu0 0.0
    %234 = vmatpush1.xpose.msra.mxu0 0.0
    %235 = vmatprep.subr.mxu0 0.0
    %236 = vmatpush1.xpose.msra.mxu0 0.0
    %237 = vmatprep.subr.mxu0 0.0
    %238 = vmatpush1.xpose.msra.mxu0 0.0
    %239 = vmatprep.subr.mxu0 0.0
    %240 = vmatpush1.xpose.msra.mxu0 0.0
    %241 = vmatprep.subr.mxu0 0.0
    %242 = vmatpush1.xpose.msra.mxu0 0.0
    %243 = vmatprep.subr.mxu0 0.0
    %244 = vmatpush1.xpose.msra.mxu0 %v211
    %245 = vmatprep.subr.mxu0 0.0
    %246 = vmatpush2.xpose.msra.mxu0 0.0
    %247 = vmatprep.subr.mxu0 0.0
    %248 = vmatpush2.xpose.msra.mxu0 0.0
    %249 = vmatprep.subr.mxu0 0.0
    %250 = vmatpush2.xpose.msra.mxu0 0.0
    %251 = vmatprep.subr.mxu0 0.0
    %252 = vmatpush2.xpose.msra.mxu0 0.0
    %253 = vmatprep.subr.mxu0 0.0
    %254 = vmatpush2.xpose.msra.mxu0 0.0
    %255 = vmatprep.subr.mxu0 0.0
    %256 = vmatpush2.xpose.msra.mxu0 0.0
    %257 = vmatprep.subr.mxu0 0.0
    %258 = vmatpush2.xpose.msra.mxu0 0.0
    %259 = vmatprep.subr.mxu0 0.0
    %260 = vmatpush2.xpose.msra.mxu0 0.0
    %261 = vmatprep.subr.mxu0 0.0
    %262 = vmatpush2.xpose.msra.mxu0 0.0
    %263 = vmatprep.subr.mxu0 0.0
    %264 = vmatpush2.xpose.msra.mxu0 0.0
    %265 = vmatprep.subr.mxu0 0.0
    %266 = vmatpush2.xpose.msra.mxu0 0.0
    %267 = vmatprep.subr.mxu0 0.0
    %268 = vmatpush2.xpose.msra.mxu0 0.0
    %269 = vmatprep.subr.mxu0 0.0
    %270 = vmatpush2.xpose.msra.mxu0 0.0
    %271 = vmatprep.subr.mxu0 0.0
    %272 = vmatpush2.xpose.msra.mxu0 0.0
    %273 = vmatprep.subr.mxu0 0.0
    %274 = vmatpush2.xpose.msra.mxu0 0.0
    %275 = vmatprep.subr.mxu0 0.0
    %276 = vmatpush2.xpose.msra.mxu0 0.0
    %277 = vmatprep.mubr.f32.mxu0 0.0
    %278 = vmatmul.mubr.f32.gmra.mxu0 %v209
    %v279 = vpop.f32.mrf.mxu0
    %v280 = vadd.f32 0.0, %v279
    %v281 = vpop.f32.mrf.mxu0
    %282 = vdwg.mxu0
    %vm283 = vcmask 64512
    %v284 = vsel %vm283, %v203, -inf
    %285 = vmax.xlane.f32.xlu0 %v284
    %v286 = vpop.xlane.xlu0 %285
    %v287 = vsel %vm283, %v280, -inf
    %288 = vmax.xlane.f32.xlu0 %v287
    %v289 = vpop.xlane.xlu0 %288
    %v290 = vsub.f32 %v203, %v286
    %v291 = vsub.f32 %v280, %v289
    %v292 = vmul.f32 %v290, 1.442695
    %v293 = vpow.pop %v292
    %v294 = vmul.f32 %v291, 1.442695
    %v295 = vpow.pop %v294
    %v296 = vsel %vm283, %v293, 0.0
    %297 = vadd.xlane.f32.xlu0 %v296
    %v298 = vpop.xlane.xlu0 %297
    %v299 = vsel %vm283, %v295, 0.0
    %300 = vadd.xlane.f32.xlu0 %v299
    %v301 = vpop.xlane.xlu0 %300
    %v302 = vrcp.pop %v298
    %v303 = vrcp.pop %v301
    %v304 = vmul.f32 %v293, %v302
    %v305 = vmul.f32 %v295, %v303
    %306 = vrot.lane.b32.xlu0 %v120, 64
    %v307 = vpop.permute.xlu0 %306
    %309 = vrot.lane.b32.xlu0 %v120, 32
    %v310 = vpop.permute.xlu0 %309
    %v313 = vsel %vm283, %v304, 0
    %315 = vmatprep.subr.mxu0 0.0
    %316 = vmatpush1.msra.mxu0 0.0
    %317 = vmatprep.subr.mxu0 0.0
    %318 = vmatpush1.msra.mxu0 0.0
    %319 = vmatprep.subr.mxu0 0.0
    %320 = vmatpush1.msra.mxu0 0.0
    %321 = vmatprep.subr.mxu0 0.0
    %322 = vmatpush1.msra.mxu0 0.0
    %323 = vmatprep.subr.mxu0 0.0
    %324 = vmatpush1.msra.mxu0 0.0
    %325 = vmatprep.subr.mxu0 0.0
    %326 = vmatpush1.msra.mxu0 0.0
    %327 = vmatprep.subr.mxu0 0.0
    %328 = vmatpush1.msra.mxu0 0.0
    %329 = vmatprep.subr.mxu0 0.0
    %330 = vmatpush1.msra.mxu0 0.0
    %331 = vmatprep.subr.mxu0 0.0
    %332 = vmatpush1.msra.mxu0 0.0
    %333 = vmatprep.subr.mxu0 0.0
    %334 = vmatpush1.msra.mxu0 0.0
    %335 = vmatprep.subr.mxu0 0.0
    %336 = vmatpush1.msra.mxu0 0.0
    %337 = vmatprep.subr.mxu0 0.0
    %338 = vmatpush1.msra.mxu0 0.0
    %339 = vmatprep.subr.mxu0 0.0
    %340 = vmatpush1.msra.mxu0 0.0
    %341 = vmatprep.subr.mxu0 0.0
    %342 = vmatpush1.msra.mxu0 0.0
    %343 = vmatprep.subr.mxu0 0.0
    %344 = vmatpush1.msra.mxu0 0.0
    %345 = vmatprep.subr.mxu0 0.0
    %346 = vmatpush1.msra.mxu0 %v307
    %347 = vmatprep.subr.mxu0 0.0
    %348 = vmatpush2.msra.mxu0 0.0
    %349 = vmatprep.subr.mxu0 0.0
    %350 = vmatpush2.msra.mxu0 0.0
    %351 = vmatprep.subr.mxu0 0.0
    %352 = vmatpush2.msra.mxu0 0.0
    %353 = vmatprep.subr.mxu0 0.0
    %354 = vmatpush2.msra.mxu0 0.0
    %355 = vmatprep.subr.mxu0 0.0
    %356 = vmatpush2.msra.mxu0 0.0
    %357 = vmatprep.subr.mxu0 0.0
    %358 = vmatpush2.msra.mxu0 0.0
    %359 = vmatprep.subr.mxu0 0.0
    %360 = vmatpush2.msra.mxu0 0.0
    %361 = vmatprep.subr.mxu0 0.0
    %362 = vmatpush2.msra.mxu0 0.0
    %363 = vmatprep.subr.mxu0 0.0
    %364 = vmatpush2.msra.mxu0 0.0
    %365 = vmatprep.subr.mxu0 0.0
    %366 = vmatpush2.msra.mxu0 0.0
    %367 = vmatprep.subr.mxu0 0.0
    %368 = vmatpush2.msra.mxu0 0.0
    %369 = vmatprep.subr.mxu0 0.0
    %370 = vmatpush2.msra.mxu0 0.0
    %371 = vmatprep.subr.mxu0 0.0
    %372 = vmatpush2.msra.mxu0 0.0
    %373 = vmatprep.subr.mxu0 0.0
    %374 = vmatpush2.msra.mxu0 0.0
    %375 = vmatprep.subr.mxu0 0.0
    %376 = vmatpush2.msra.mxu0 0.0
    %377 = vmatprep.subr.mxu0 0.0
    %378 = vmatpush2.msra.mxu0 0.0
    %379 = vmatprep.mubr.f32.mxu0 0.0
    %380 = vmatmul.mubr.f32.gmra.mxu0 %v313
    %v381 = vpop.f32.mrf.mxu0
    %v382 = vadd.f32 %v310, %v381
    %v383 = vpop.f32.mrf.mxu0
    %384 = vdwg.mxu0
    %385 = vrot.lane.b32.xlu0 %v125, 64
    %v386 = vpop.permute.xlu0 %385
    %388 = vrot.lane.b32.xlu0 %v125, 32
    %v389 = vpop.permute.xlu0 %388
    %v392 = vsel %vm283, %v305, 0
    %394 = vmatprep.subr.mxu0 0.0
    %395 = vmatpush1.msra.mxu0 0.0
    %396 = vmatprep.subr.mxu0 0.0
    %397 = vmatpush1.msra.mxu0 0.0
    %398 = vmatprep.subr.mxu0 0.0
    %399 = vmatpush1.msra.mxu0 0.0
    %400 = vmatprep.subr.mxu0 0.0
    %401 = vmatpush1.msra.mxu0 0.0
    %402 = vmatprep.subr.mxu0 0.0
    %403 = vmatpush1.msra.mxu0 0.0
    %404 = vmatprep.subr.mxu0 0.0
    %405 = vmatpush1.msra.mxu0 0.0
    %406 = vmatprep.subr.mxu0 0.0
    %407 = vmatpush1.msra.mxu0 0.0
    %408 = vmatprep.subr.mxu0 0.0
    %409 = vmatpush1.msra.mxu0 0.0
    %410 = vmatprep.subr.mxu0 0.0
    %411 = vmatpush1.msra.mxu0 0.0
    %412 = vmatprep.subr.mxu0 0.0
    %413 = vmatpush1.msra.mxu0 0.0
    %414 = vmatprep.subr.mxu0 0.0
    %415 = vmatpush1.msra.mxu0 0.0
    %416 = vmatprep.subr.mxu0 0.0
    %417 = vmatpush1.msra.mxu0 0.0
    %418 = vmatprep.subr.mxu0 0.0
    %419 = vmatpush1.msra.mxu0 0.0
    %420 = vmatprep.subr.mxu0 0.0
    %421 = vmatpush1.msra.mxu0 0.0
    %422 = vmatprep.subr.mxu0 0.0
    %423 = vmatpush1.msra.mxu0 0.0
    %424 = vmatprep.subr.mxu0 0.0
    %425 = vmatpush1.msra.mxu0 %v386
    %426 = vmatprep.subr.mxu0 0.0
    %427 = vmatpush2.msra.mxu0 0.0
    %428 = vmatprep.subr.mxu0 0.0
    %429 = vmatpush2.msra.mxu0 0.0
    %430 = vmatprep.subr.mxu0 0.0
    %431 = vmatpush2.msra.mxu0 0.0
    %432 = vmatprep.subr.mxu0 0.0
    %433 = vmatpush2.msra.mxu0 0.0
    %434 = vmatprep.subr.mxu0 0.0
    %435 = vmatpush2.msra.mxu0 0.0
    %436 = vmatprep.subr.mxu0 0.0
    %437 = vmatpush2.msra.mxu0 0.0
    %438 = vmatprep.subr.mxu0 0.0
    %439 = vmatpush2.msra.mxu0 0.0
    %440 = vmatprep.subr.mxu0 0.0
    %441 = vmatpush2.msra.mxu0 0.0
    %442 = vmatprep.subr.mxu0 0.0
    %443 = vmatpush2.msra.mxu0 0.0
    %444 = vmatprep.subr.mxu0 0.0
    %445 = vmatpush2.msra.mxu0 0.0
    %446 = vmatprep.subr.mxu0 0.0
    %447 = vmatpush2.msra.mxu0 0.0
    %448 = vmatprep.subr.mxu0 0.0
    %449 = vmatpush2.msra.mxu0 0.0
    %450 = vmatprep.subr.mxu0 0.0
    %451 = vmatpush2.msra.mxu0 0.0
    %452 = vmatprep.subr.mxu0 0.0
    %453 = vmatpush2.msra.mxu0 0.0
    %454 = vmatprep.subr.mxu0 0.0
    %455 = vmatpush2.msra.mxu0 0.0
    %456 = vmatprep.subr.mxu0 0.0
    %457 = vmatpush2.msra.mxu0 0.0
    %458 = vmatprep.mubr.f32.mxu0 0.0
    %459 = vmatmul.mubr.f32.gmra.mxu0 %v392
    %v460 = vpop.f32.mrf.mxu0
    %v461 = vadd.f32 %v389, %v460
    %v462 = vpop.f32.mrf.mxu0
    %463 = vdwg.mxu0
    %v464 = vmax.f32 %v382, 0.0
    %v465 = vmax.f32 %v461, 0.0
    %466 = vst.msk [vmem:[#allocation7] sm:$0xff] %vm131, %v464
    %467 = vst.msk [vmem:[#allocation7 + $0x8] sm:$0xff] %vm131, %v465
    %468 = vrot.lane.b32.xlu0 %v120, 112
    %v469 = vpop.permute.xlu0 %468
    %470 = vrot.lane.b32.xlu0 %v120, 80
    %v471 = vpop.permute.xlu0 %470
    %v472 = vsel %vm131, %v469, 0
    %v474 = vsel %vm131, %v471, 0
    %476 = vmatprep.subr.mxu0 0.0
    %477 = vmatpush1.xpose.msra.mxu0 0.0
    %478 = vmatprep.subr.mxu0 0.0
    %479 = vmatpush1.xpose.msra.mxu0 0.0
    %480 = vmatprep.subr.mxu0 0.0
    %481 = vmatpush1.xpose.msra.mxu0 0.0
    %482 = vmatprep.subr.mxu0 0.0
    %483 = vmatpush1.xpose.msra.mxu0 0.0
    %484 = vmatprep.subr.mxu0 0.0
    %485 = vmatpush1.xpose.msra.mxu0 0.0
    %486 = vmatprep.subr.mxu0 0.0
    %487 = vmatpush1.xpose.msra.mxu0 0.0
    %488 = vmatprep.subr.mxu0 0.0
    %489 = vmatpush1.xpose.msra.mxu0 0.0
    %490 = vmatprep.subr.mxu0 0.0
    %491 = vmatpush1.xpose.msra.mxu0 0.0
    %492 = vmatprep.subr.mxu0 0.0
    %493 = vmatpush1.xpose.msra.mxu0 0.0
    %494 = vmatprep.subr.mxu0 0.0
    %495 = vmatpush1.xpose.msra.mxu0 0.0
    %496 = vmatprep.subr.mxu0 0.0
    %497 = vmatpush1.xpose.msra.mxu0 0.0
    %498 = vmatprep.subr.mxu0 0.0
    %499 = vmatpush1.xpose.msra.mxu0 0.0
    %500 = vmatprep.subr.mxu0 0.0
    %501 = vmatpush1.xpose.msra.mxu0 0.0
    %502 = vmatprep.subr.mxu0 0.0
    %503 = vmatpush1.xpose.msra.mxu0 0.0
    %504 = vmatprep.subr.mxu0 0.0
    %505 = vmatpush1.xpose.msra.mxu0 0.0
    %506 = vmatprep.subr.mxu0 0.0
    %507 = vmatpush1.xpose.msra.mxu0 %v474
    %508 = vmatprep.subr.mxu0 0.0
    %509 = vmatpush2.xpose.msra.mxu0 0.0
    %510 = vmatprep.subr.mxu0 0.0
    %511 = vmatpush2.xpose.msra.mxu0 0.0
    %512 = vmatprep.subr.mxu0 0.0
    %513 = vmatpush2.xpose.msra.mxu0 0.0
    %514 = vmatprep.subr.mxu0 0.0
    %515 = vmatpush2.xpose.msra.mxu0 0.0
    %516 = vmatprep.subr.mxu0 0.0
    %517 = vmatpush2.xpose.msra.mxu0 0.0
    %518 = vmatprep.subr.mxu0 0.0
    %519 = vmatpush2.xpose.msra.mxu0 0.0
    %520 = vmatprep.subr.mxu0 0.0
    %521 = vmatpush2.xpose.msra.mxu0 0.0
    %522 = vmatprep.subr.mxu0 0.0
    %523 = vmatpush2.xpose.msra.mxu0 0.0
    %524 = vmatprep.subr.mxu0 0.0
    %525 = vmatpush2.xpose.msra.mxu0 0.0
    %526 = vmatprep.subr.mxu0 0.0
    %527 = vmatpush2.xpose.msra.mxu0 0.0
    %528 = vmatprep.subr.mxu0 0.0
    %529 = vmatpush2.xpose.msra.mxu0 0.0
    %530 = vmatprep.subr.mxu0 0.0
    %531 = vmatpush2.xpose.msra.mxu0 0.0
    %532 = vmatprep.subr.mxu0 0.0
    %533 = vmatpush2.xpose.msra.mxu0 0.0
    %534 = vmatprep.subr.mxu0 0.0
    %535 = vmatpush2.xpose.msra.mxu0 0.0
    %536 = vmatprep.subr.mxu0 0.0
    %537 = vmatpush2.xpose.msra.mxu0 0.0
    %538 = vmatprep.subr.mxu0 0.0
    %539 = vmatpush2.xpose.msra.mxu0 0.0
    %540 = vmatprep.mubr.f32.mxu0 0.0
    %541 = vmatmul.mubr.f32.gmra.mxu0 %v472
    %v542 = vpop.f32.mrf.mxu0
    %v543 = vadd.f32 0.0, %v542
    %v544 = vpop.f32.mrf.mxu0
    %545 = vdwg.mxu0
    %546 = vrot.lane.b32.xlu0 %v125, 112
    %v547 = vpop.permute.xlu0 %546
    %548 = vrot.lane.b32.xlu0 %v125, 80
    %v549 = vpop.permute.xlu0 %548
    %v550 = vsel %vm131, %v547, 0
    %v552 = vsel %vm131, %v549, 0
    %554 = vmatprep.subr.mxu0 0.0
    %555 = vmatpush1.xpose.msra.mxu0 0.0
    %556 = vmatprep.subr.mxu0 0.0
    %557 = vmatpush1.xpose.msra.mxu0 0.0
    %558 = vmatprep.subr.mxu0 0.0
    %559 = vmatpush1.xpose.msra.mxu0 0.0
    %560 = vmatprep.subr.mxu0 0.0
    %561 = vmatpush1.xpose.msra.mxu0 0.0
    %562 = vmatprep.subr.mxu0 0.0
    %563 = vmatpush1.xpose.msra.mxu0 0.0
    %564 = vmatprep.subr.mxu0 0.0
    %565 = vmatpush1.xpose.msra.mxu0 0.0
    %566 = vmatprep.subr.mxu0 0.0
    %567 = vmatpush1.xpose.msra.mxu0 0.0
    %568 = vmatprep.subr.mxu0 0.0
    %569 = vmatpush1.xpose.msra.mxu0 0.0
    %570 = vmatprep.subr.mxu0 0.0
    %571 = vmatpush1.xpose.msra.mxu0 0.0
    %572 = vmatprep.subr.mxu0 0.0
    %573 = vmatpush1.xpose.msra.mxu0 0.0
    %574 = vmatprep.subr.mxu0 0.0
    %575 = vmatpush1.xpose.msra.mxu0 0.0
    %576 = vmatprep.subr.mxu0 0.0
    %577 = vmatpush1.xpose.msra.mxu0 0.0
    %578 = vmatprep.subr.mxu0 0.0
    %579 = vmatpush1.xpose.msra.mxu0 0.0
    %580 = vmatprep.subr.mxu0 0.0
    %581 = vmatpush1.xpose.msra.mxu0 0.0
    %582 = vmatprep.subr.mxu0 0.0
    %583 = vmatpush1.xpose.msra.mxu0 0.0
    %584 = vmatprep.subr.mxu0 0.0
    %585 = vmatpush1.xpose.msra.mxu0 %v552
    %586 = vmatprep.subr.mxu0 0.0
    %587 = vmatpush2.xpose.msra.mxu0 0.0
    %588 = vmatprep.subr.mxu0 0.0
    %589 = vmatpush2.xpose.msra.mxu0 0.0
    %590 = vmatprep.subr.mxu0 0.0
    %591 = vmatpush2.xpose.msra.mxu0 0.0
    %592 = vmatprep.subr.mxu0 0.0
    %593 = vmatpush2.xpose.msra.mxu0 0.0
    %594 = vmatprep.subr.mxu0 0.0
    %595 = vmatpush2.xpose.msra.mxu0 0.0
    %596 = vmatprep.subr.mxu0 0.0
    %597 = vmatpush2.xpose.msra.mxu0 0.0
    %598 = vmatprep.subr.mxu0 0.0
    %599 = vmatpush2.xpose.msra.mxu0 0.0
    %600 = vmatprep.subr.mxu0 0.0
    %601 = vmatpush2.xpose.msra.mxu0 0.0
    %602 = vmatprep.subr.mxu0 0.0
    %603 = vmatpush2.xpose.msra.mxu0 0.0
    %604 = vmatprep.subr.mxu0 0.0
    %605 = vmatpush2.xpose.msra.mxu0 0.0
    %606 = vmatprep.subr.mxu0 0.0
    %607 = vmatpush2.xpose.msra.mxu0 0.0
    %608 = vmatprep.subr.mxu0 0.0
    %609 = vmatpush2.xpose.msra.mxu0 0.0
    %610 = vmatprep.subr.mxu0 0.0
    %611 = vmatpush2.xpose.msra.mxu0 0.0
    %612 = vmatprep.subr.mxu0 0.0
    %613 = vmatpush2.xpose.msra.mxu0 0.0
    %614 = vmatprep.subr.mxu0 0.0
    %615 = vmatpush2.xpose.msra.mxu0 0.0
    %616 = vmatprep.subr.mxu0 0.0
    %617 = vmatpush2.xpose.msra.mxu0 0.0
    %618 = vmatprep.mubr.f32.mxu0 0.0
    %619 = vmatmul.mubr.f32.gmra.mxu0 %v550
    %v620 = vpop.f32.mrf.mxu0
    %v621 = vadd.f32 0.0, %v620
    %v622 = vpop.f32.mrf.mxu0
    %623 = vdwg.mxu0
    %v624 = vsel %vm283, %v543, -inf
    %625 = vmax.xlane.f32.xlu0 %v624
    %v626 = vpop.xlane.xlu0 %625
    %v627 = vsel %vm283, %v621, -inf
    %628 = vmax.xlane.f32.xlu0 %v627
    %v629 = vpop.xlane.xlu0 %628
    %v630 = vsub.f32 %v543, %v626
    %v631 = vsub.f32 %v621, %v629
    %v632 = vmul.f32 %v630, 1.442695
    %v633 = vpow.pop %v632
    %v634 = vmul.f32 %v631, 1.442695
    %v635 = vpow.pop %v634
    %v636 = vsel %vm283, %v633, 0.0
    %637 = vadd.xlane.f32.xlu0 %v636
    %v638 = vpop.xlane.xlu0 %637
    %v639 = vsel %vm283, %v635, 0.0
    %640 = vadd.xlane.f32.xlu0 %v639
    %v641 = vpop.xlane.xlu0 %640
    %v642 = vrcp.pop %v638
    %v643 = vrcp.pop %v641
    %v644 = vmul.f32 %v633, %v642
    %v645 = vmul.f32 %v635, %v643
    %646 = vrot.lane.b32.xlu0 %v120, 48
    %v647 = vpop.permute.xlu0 %646
    %649 = vrot.lane.b32.xlu0 %v120, 16
    %v650 = vpop.permute.xlu0 %649
    %v653 = vsel %vm283, %v644, 0
    %655 = vmatprep.subr.mxu0 0.0
    %656 = vmatpush1.msra.mxu0 0.0
    %657 = vmatprep.subr.mxu0 0.0
    %658 = vmatpush1.msra.mxu0 0.0
    %659 = vmatprep.subr.mxu0 0.0
    %660 = vmatpush1.msra.mxu0 0.0
    %661 = vmatprep.subr.mxu0 0.0
    %662 = vmatpush1.msra.mxu0 0.0
    %663 = vmatprep.subr.mxu0 0.0
    %664 = vmatpush1.msra.mxu0 0.0
    %665 = vmatprep.subr.mxu0 0.0
    %666 = vmatpush1.msra.mxu0 0.0
    %667 = vmatprep.subr.mxu0 0.0
    %668 = vmatpush1.msra.mxu0 0.0
    %669 = vmatprep.subr.mxu0 0.0
    %670 = vmatpush1.msra.mxu0 0.0
    %671 = vmatprep.subr.mxu0 0.0
    %672 = vmatpush1.msra.mxu0 0.0
    %673 = vmatprep.subr.mxu0 0.0
    %674 = vmatpush1.msra.mxu0 0.0
    %675 = vmatprep.subr.mxu0 0.0
    %676 = vmatpush1.msra.mxu0 0.0
    %677 = vmatprep.subr.mxu0 0.0
    %678 = vmatpush1.msra.mxu0 0.0
    %679 = vmatprep.subr.mxu0 0.0
    %680 = vmatpush1.msra.mxu0 0.0
    %681 = vmatprep.subr.mxu0 0.0
    %682 = vmatpush1.msra.mxu0 0.0
    %683 = vmatprep.subr.mxu0 0.0
    %684 = vmatpush1.msra.mxu0 0.0
    %685 = vmatprep.subr.mxu0 0.0
    %686 = vmatpush1.msra.mxu0 %v647
    %687 = vmatprep.subr.mxu0 0.0
    %688 = vmatpush2.msra.mxu0 0.0
    %689 = vmatprep.subr.mxu0 0.0
    %690 = vmatpush2.msra.mxu0 0.0
    %691 = vmatprep.subr.mxu0 0.0
    %692 = vmatpush2.msra.mxu0 0.0
    %693 = vmatprep.subr.mxu0 0.0
    %694 = vmatpush2.msra.mxu0 0.0
    %695 = vmatprep.subr.mxu0 0.0
    %696 = vmatpush2.msra.mxu0 0.0
    %697 = vmatprep.subr.mxu0 0.0
    %698 = vmatpush2.msra.mxu0 0.0
    %699 = vmatprep.subr.mxu0 0.0
    %700 = vmatpush2.msra.mxu0 0.0
    %701 = vmatprep.subr.mxu0 0.0
    %702 = vmatpush2.msra.mxu0 0.0
    %703 = vmatprep.subr.mxu0 0.0
    %704 = vmatpush2.msra.mxu0 0.0
    %705 = vmatprep.subr.mxu0 0.0
    %706 = vmatpush2.msra.mxu0 0.0
    %707 = vmatprep.subr.mxu0 0.0
    %708 = vmatpush2.msra.mxu0 0.0
    %709 = vmatprep.subr.mxu0 0.0
    %710 = vmatpush2.msra.mxu0 0.0
    %711 = vmatprep.subr.mxu0 0.0
    %712 = vmatpush2.msra.mxu0 0.0
    %713 = vmatprep.subr.mxu0 0.0
    %714 = vmatpush2.msra.mxu0 0.0
    %715 = vmatprep.subr.mxu0 0.0
    %716 = vmatpush2.msra.mxu0 0.0
    %717 = vmatprep.subr.mxu0 0.0
    %718 = vmatpush2.msra.mxu0 0.0
    %719 = vmatprep.mubr.f32.mxu0 0.0
    %720 = vmatmul.mubr.f32.gmra.mxu0 %v653
    %v721 = vpop.f32.mrf.mxu0
    %v722 = vadd.f32 %v650, %v721
    %v723 = vpop.f32.mrf.mxu0
    %724 = vdwg.mxu0
    %725 = vrot.lane.b32.xlu0 %v125, 48
    %v726 = vpop.permute.xlu0 %725
    %728 = vrot.lane.b32.xlu0 %v125, 16
    %v729 = vpop.permute.xlu0 %728
    %v732 = vsel %vm283, %v645, 0
    %734 = vmatprep.subr.mxu0 0.0
    %735 = vmatpush1.msra.mxu0 0.0
    %736 = vmatprep.subr.mxu0 0.0
    %737 = vmatpush1.msra.mxu0 0.0
    %738 = vmatprep.subr.mxu0 0.0
    %739 = vmatpush1.msra.mxu0 0.0
    %740 = vmatprep.subr.mxu0 0.0
    %741 = vmatpush1.msra.mxu0 0.0
    %742 = vmatprep.subr.mxu0 0.0
    %743 = vmatpush1.msra.mxu0 0.0
    %744 = vmatprep.subr.mxu0 0.0
    %745 = vmatpush1.msra.mxu0 0.0
    %746 = vmatprep.subr.mxu0 0.0
    %747 = vmatpush1.msra.mxu0 0.0
    %748 = vmatprep.subr.mxu0 0.0
    %749 = vmatpush1.msra.mxu0 0.0
    %750 = vmatprep.subr.mxu0 0.0
    %751 = vmatpush1.msra.mxu0 0.0
    %752 = vmatprep.subr.mxu0 0.0
    %753 = vmatpush1.msra.mxu0 0.0
    %754 = vmatprep.subr.mxu0 0.0
    %755 = vmatpush1.msra.mxu0 0.0
    %756 = vmatprep.subr.mxu0 0.0
    %757 = vmatpush1.msra.mxu0 0.0
    %758 = vmatprep.subr.mxu0 0.0
    %759 = vmatpush1.msra.mxu0 0.0
    %760 = vmatprep.subr.mxu0 0.0
    %761 = vmatpush1.msra.mxu0 0.0
    %762 = vmatprep.subr.mxu0 0.0
    %763 = vmatpush1.msra.mxu0 0.0
    %764 = vmatprep.subr.mxu0 0.0
    %765 = vmatpush1.msra.mxu0 %v726
    %766 = vmatprep.subr.mxu0 0.0
    %767 = vmatpush2.msra.mxu0 0.0
    %768 = vmatprep.subr.mxu0 0.0
    %769 = vmatpush2.msra.mxu0 0.0
    %770 = vmatprep.subr.mxu0 0.0
    %771 = vmatpush2.msra.mxu0 0.0
    %772 = vmatprep.subr.mxu0 0.0
    %773 = vmatpush2.msra.mxu0 0.0
    %774 = vmatprep.subr.mxu0 0.0
    %775 = vmatpush2.msra.mxu0 0.0
    %776 = vmatprep.subr.mxu0 0.0
    %777 = vmatpush2.msra.mxu0 0.0
    %778 = vmatprep.subr.mxu0 0.0
    %779 = vmatpush2.msra.mxu0 0.0
    %780 = vmatprep.subr.mxu0 0.0
    %781 = vmatpush2.msra.mxu0 0.0
    %782 = vmatprep.subr.mxu0 0.0
    %783 = vmatpush2.msra.mxu0 0.0
    %784 = vmatprep.subr.mxu0 0.0
    %785 = vmatpush2.msra.mxu0 0.0
    %786 = vmatprep.subr.mxu0 0.0
    %787 = vmatpush2.msra.mxu0 0.0
    %788 = vmatprep.subr.mxu0 0.0
    %789 = vmatpush2.msra.mxu0 0.0
    %790 = vmatprep.subr.mxu0 0.0
    %791 = vmatpush2.msra.mxu0 0.0
    %792 = vmatprep.subr.mxu0 0.0
    %793 = vmatpush2.msra.mxu0 0.0
    %794 = vmatprep.subr.mxu0 0.0
    %795 = vmatpush2.msra.mxu0 0.0
    %796 = vmatprep.subr.mxu0 0.0
    %797 = vmatpush2.msra.mxu0 0.0
    %798 = vmatprep.mubr.f32.mxu0 0.0
    %799 = vmatmul.mubr.f32.gmra.mxu0 %v732
    %v800 = vpop.f32.mrf.mxu0
    %v801 = vadd.f32 %v729, %v800
    %v802 = vpop.f32.mrf.mxu0
    %803 = vdwg.mxu0
    %v804 = vmax.f32 %v722, 0.0
    %v805 = vmax.f32 %v801, 0.0
    %808 = vrot.lane.b32.xlu0 %v804, 16
    %v809 = vpop.permute.xlu0 %808
    %810 = vrot.lane.b32.xlu0 %v805, 16
    %v811 = vpop.permute.xlu0 %810
    %vm814 = vcmask 261248
    %815 = vst.msk [vmem:[#allocation7] sm:$0xff] %vm814, %v809
    %816 = vst.msk [vmem:[#allocation7 + $0x8] sm:$0xff] %vm814, %v811
    // Predicated region
    $region18: #{tpu_custom_call.1} parent=1 // pred_check
      _
    $region19: #{tpu_custom_call.1} parent=1 // pred_check_branch
      %818 = sbr.rel (0) target = $region21
    $region20: #{tpu_custom_call.1} parent=1 // pred_region
      %s820 = ssub.s32 256, 256
      %821 = vsyncadd [#allocation4], %s820
      %s822 = sshll.u32 [#allocation7], 4
      %s823 = int_to_ptr.vmem [resolvable:$true] %s822
      %828 = dma.vmem_to_hbm [thread:$0]  %s823, 256, %s2, [#allocation4], 128, 128, 8
    $region21: #{tpu_custom_call.1} parent=1 // pred_fallthru
      _
    // Predicated region
    $region22: #{tpu_custom_call.1} parent=1 // pred_check
      _
    $region23: #{tpu_custom_call.1} parent=1 // pred_check_branch
      %830 = sbr.rel (0) target = $region25
    $region24: #{tpu_custom_call.1} parent=1 // pred_region
      %831 = dma.done [#allocation4], 256
    $region25: #{tpu_custom_call.1} parent=1 // pred_fallthru
      _
    %832 = vsyncpa [#allocation3], 1
    %833 = vsyncpa [#allocation6], 1
    %834 = vsyncpa [#allocation4], 1

</llo_original>
